<compile_context>
chip_gen: v5e
topology: v5e:2x2
jax: 0.10.0
libtpu: 0.0.40
codegen_flags: <defaults>
</compile_context>

<pallas_src>
import jax
import jax.numpy as jnp
from jax.experimental import pallas as pl
from jax.experimental.pallas import tpu as pltpu

HIDDEN = 500
HIDDEN_PAD = 512   # next multiple of 128
OUT = 1
MAX_BM = 8192      # max rows per grid step


def _mlp_kernel(x_ref, w1_ref, b1_ref, w2_ref, b2_ref, o_ref):
    # fc: (bm, Z) @ (Z, 512) on the MXU, f32 accumulate.
    h = jnp.dot(x_ref[...], w1_ref[...], preferred_element_type=jnp.float32)
    # bias add (VPU) + tanh (EUP) — both sit in otherwise-idle slots.
    h = jnp.tanh(h + b1_ref[...])
    # out layer (500 -> 1): elementwise multiply + lane reduce (VPU + XLU)
    # instead of a matmul against a 99%-zero padded weight tile.
    logits = jnp.sum(h * w2_ref[...], axis=-1, keepdims=True)      # (bm, 1)
    # Store the (bm, 1) column directly — no 128-lane padded writeback.
    o_ref[...] = (logits + b2_ref[...]).astype(o_ref.dtype)        # (bm, 1)


def prepare_params(w1, b1, w2, b2):
    """Pad parameters to TPU-friendly shapes ONCE (not per forward call).

    Args:
      w1: (Z, 500)  -- torch fc.weight.T
      b1: (500,)
      w2: (500, 1)  -- torch out.weight.T
      b2: (1,)
    Returns:
      (w1_p, b1_p, w2_row, b2_sc) padded float32 arrays.
    """
    w1 = jnp.asarray(w1, jnp.float32)
    b1 = jnp.asarray(b1, jnp.float32)
    w2 = jnp.asarray(w2, jnp.float32)
    b2 = jnp.asarray(b2, jnp.float32)

    pad_h = HIDDEN_PAD - HIDDEN
    w1_p = jnp.pad(w1, ((0, 0), (0, pad_h)))                       # (Z, 512)
    b1_p = jnp.pad(b1.reshape(1, HIDDEN), ((0, 0), (0, pad_h)))    # (1, 512)
    w2_row = jnp.pad(w2[:, 0].reshape(1, HIDDEN),
                     ((0, 0), (0, pad_h)))                         # (1, 512)
    b2_sc = b2.reshape(1, 1)                                       # (1, 1)
    return w1_p, b1_p, w2_row, b2_sc


def _round_up(n, m):
    return ((n + m - 1) // m) * m


def _pick_bm(B):
    """Batch tile: big enough to amortize per-step overhead, and for mid-size
    batches split into >=2 steps so v7x's 'parallel' axis uses both TCs."""
    if B <= 128:
        return B                                   # single block; tiny batch
    if B <= 2 * MAX_BM:
        return min(_round_up(pl.cdiv(B, 2), 8), MAX_BM)   # >= 2 grid steps
    return MAX_BM


def ionization_energy_classifier(x, params):
    """Forward pass.

    Args:
      x:      (B, Z) float32
      params: output of prepare_params (pre-padded weights/biases)
    Returns:
      (B, 1) float32 logits
    """
    w1_p, b1_p, w2_row, b2_sc = params
    B, Z = x.shape

    bm = _pick_bm(B)
    grid = (pl.cdiv(B, bm),)

    # Cost estimate — all fields must be Python ints.
    flops = int(2 * B * Z * HIDDEN_PAD          # fc matmul
                + B * HIDDEN_PAD                # bias add
                + 2 * B * HIDDEN_PAD            # mul + lane reduce
                + B)                            # out bias add
    transcendentals = int(B * HIDDEN_PAD)       # tanh
    bytes_accessed = int(4 * (B * Z             # x read
                              + Z * HIDDEN_PAD  # w1
                              + HIDDEN_PAD      # b1
                              + HIDDEN_PAD      # w2 row
                              + 1               # b2
                              + B * OUT))       # logits write

    out = pl.pallas_call(
        _mlp_kernel,
        out_shape=jax.ShapeDtypeStruct((B, OUT), jnp.float32),
        grid=grid,
        in_specs=[
            pl.BlockSpec((bm, Z), lambda i: (i, 0)),
            pl.BlockSpec((Z, HIDDEN_PAD), lambda i: (0, 0)),
            pl.BlockSpec((1, HIDDEN_PAD), lambda i: (0, 0)),
            pl.BlockSpec((1, HIDDEN_PAD), lambda i: (0, 0)),
            pl.BlockSpec((1, 1), lambda i: (0, 0)),
        ],
        out_specs=pl.BlockSpec((bm, OUT), lambda i: (i, 0)),
        compiler_params=pltpu.CompilerParams(
            dimension_semantics=("parallel",)),
        cost_estimate=pl.CostEstimate(
            flops=flops,
            transcendentals=transcendentals,
            bytes_accessed=bytes_accessed),
    )(x, w1_p, b1_p, w2_row, b2_sc)

    return out


if __name__ == "__main__":
    key = jax.random.PRNGKey(0)
    B = 8
    Z = 32  # z_size

    k_x, k_w1, k_b1, k_w2, k_b2 = jax.random.split(key, 5)

    # Deterministic, torch-Linear-style uniform init: U(-1/sqrt(fan_in), 1/sqrt(fan_in))
    bound1 = 1.0 / jnp.sqrt(Z)
    bound2 = 1.0 / jnp.sqrt(HIDDEN)

    x = jax.random.normal(k_x, (B, Z), dtype=jnp.float32)
    w1 = jax.random.uniform(k_w1, (Z, HIDDEN), jnp.float32, -bound1, bound1)
    b1 = jax.random.uniform(k_b1, (HIDDEN,), jnp.float32, -bound1, bound1)
    w2 = jax.random.uniform(k_w2, (HIDDEN, OUT), jnp.float32, -bound2, bound2)
    b2 = jax.random.uniform(k_b2, (OUT,), jnp.float32, -bound2, bound2)

    # Pad parameters once (init-time), reuse across every forward call.
    params = prepare_params(w1, b1, w2, b2)
    params = jax.block_until_ready(params)

    logits = ionization_energy_classifier(x, params)
    jax.block_until_ready(logits)

    # Pure-JAX reference check
    ref = jnp.tanh(x @ w1 + b1) @ w2 + b2
    assert logits.shape == (B, OUT), logits.shape
    assert jnp.allclose(logits, ref, atol=1e-5, rtol=1e-5), (
        float(jnp.max(jnp.abs(logits - ref))))

    print("KERNEL_OK")
</pallas_src>

<mosaic_0001>
module attributes {stable_mosaic.version = 11 : i64} {
  func.func @_mlp_kernel(%arg0: i32, %arg1: memref<8x32xf32, #tpu.memory_space<vmem>>, %arg2: memref<32x512xf32, #tpu.memory_space<vmem>>, %arg3: memref<1x512xf32, #tpu.memory_space<vmem>>, %arg4: memref<1x512xf32, #tpu.memory_space<vmem>>, %arg5: memref<1x1xf32, #tpu.memory_space<vmem>>, %arg6: memref<8x1xf32, #tpu.memory_space<vmem>>) attributes {dimension_semantics = [#tpu.dimension_semantics<parallel>], iteration_bounds = array<i64: 1>, scalar_prefetch = 0 : i64, scratch_operands = 0 : i64, tpu.core_type = #tpu.core_type<tc>, window_params = [{transform_indices = @transform_0, window_bounds = array<i64: 8, 32>}, {pipeline_mode = #tpu.pipeline_mode<synchronous>, transform_indices = @transform_1, window_bounds = array<i64: 32, 512>}, {pipeline_mode = #tpu.pipeline_mode<synchronous>, transform_indices = @transform_2, window_bounds = array<i64: 1, 512>}, {pipeline_mode = #tpu.pipeline_mode<synchronous>, transform_indices = @transform_3, window_bounds = array<i64: 1, 512>}, {pipeline_mode = #tpu.pipeline_mode<synchronous>, transform_indices = @transform_4, window_bounds = array<i64: 1, 1>}, {transform_indices = @transform_5, window_bounds = array<i64: 8, 1>}]} {
    %c0 = arith.constant 0 : index
    %c0_0 = arith.constant 0 : index
    %0 = vector.load %arg1[%c0, %c0_0] : memref<8x32xf32, #tpu.memory_space<vmem>>, vector<8x32xf32>
    %c0_1 = arith.constant 0 : index
    %c0_2 = arith.constant 0 : index
    %1 = vector.load %arg2[%c0_1, %c0_2] : memref<32x512xf32, #tpu.memory_space<vmem>>, vector<32x512xf32>
    %cst = arith.constant dense<0.000000e+00> : vector<8x512xf32>
    %2 = tpu.matmul %0, %1, %cst {dimension_numbers = #tpu.dot_dimension_numbers<[1], [0], [0], [1], [0, 0, 1, 1], [], []>} : vector<8x32xf32>, vector<32x512xf32>, vector<8x512xf32> -> vector<8x512xf32>
    %c0_3 = arith.constant 0 : index
    %c0_4 = arith.constant 0 : index
    %3 = vector.load %arg3[%c0_3, %c0_4] : memref<1x512xf32, #tpu.memory_space<vmem>>, vector<1x512xf32>
    %4 = vector.broadcast %3 : vector<1x512xf32> to vector<8x512xf32>
    %5 = arith.addf %2, %4 : vector<8x512xf32>
    %6 = math.tanh %5 : vector<8x512xf32>
    %c0_5 = arith.constant 0 : index
    %c0_6 = arith.constant 0 : index
    %7 = vector.load %arg4[%c0_5, %c0_6] : memref<1x512xf32, #tpu.memory_space<vmem>>, vector<1x512xf32>
    %8 = vector.broadcast %7 : vector<1x512xf32> to vector<8x512xf32>
    %9 = arith.mulf %6, %8 : vector<8x512xf32>
    %cst_7 = arith.constant dense<0.000000e+00> : vector<8xf32>
    %10 = vector.multi_reduction <add>, %9, %cst_7 [1] : vector<8x512xf32> to vector<8xf32>
    %11 = vector.shape_cast %10 : vector<8xf32> to vector<8x1xf32>
    %c0_8 = arith.constant 0 : index
    %c0_9 = arith.constant 0 : index
    %12 = vector.load %arg5[%c0_8, %c0_9] : memref<1x1xf32, #tpu.memory_space<vmem>>, vector<1x1xf32>
    %13 = vector.broadcast %12 : vector<1x1xf32> to vector<8x1xf32>
    %14 = arith.addf %11, %13 : vector<8x1xf32>
    %c0_10 = arith.constant 0 : index
    %c0_11 = arith.constant 0 : index
    %15 = vector.load %arg6[%c0_10, %c0_11] : memref<8x1xf32, #tpu.memory_space<vmem>>, vector<8x1xf32>
    tpu.vector_store %arg6[%c0_10, %c0_11], %14 {strides = array<i32>} : memref<8x1xf32, #tpu.memory_space<vmem>>, vector<8x1xf32>,
    return
  }
  func.func @transform_0(%arg0: i32) -> (i32, i32) {
    %c0_i32 = arith.constant 0 : i32
    %c0_i32_0 = arith.constant 0 : i32
    return %arg0, %c0_i32 : i32, i32
  }
  func.func @transform_1(%arg0: i32) -> (i32, i32) {
    %c0_i32 = arith.constant 0 : i32
    %c0_i32_0 = arith.constant 0 : i32
    %c0_i32_1 = arith.constant 0 : i32
    return %c0_i32, %c0_i32_0 : i32, i32
  }
  func.func @transform_2(%arg0: i32) -> (i32, i32) {
    %c0_i32 = arith.constant 0 : i32
    %c0_i32_0 = arith.constant 0 : i32
    %c0_i32_1 = arith.constant 0 : i32
    return %c0_i32, %c0_i32_0 : i32, i32
  }
  func.func @transform_3(%arg0: i32) -> (i32, i32) {
    %c0_i32 = arith.constant 0 : i32
    %c0_i32_0 = arith.constant 0 : i32
    %c0_i32_1 = arith.constant 0 : i32
    return %c0_i32, %c0_i32_0 : i32, i32
  }
  func.func @transform_4(%arg0: i32) -> (i32, i32) {
    %c0_i32 = arith.constant 0 : i32
    %c0_i32_0 = arith.constant 0 : i32
    %c0_i32_1 = arith.constant 0 : i32
    return %c0_i32, %c0_i32_0 : i32, i32
  }
  func.func @transform_5(%arg0: i32) -> (i32, i32) {
    %c0_i32 = arith.constant 0 : i32
    %c0_i32_0 = arith.constant 0 : i32
    return %arg0, %c0_i32 : i32, i32
  }
}

</mosaic_0001>

<llo_original>
// kernel: tpu_custom_call.1
$region0: #{tpu_custom_call.1}
  #allocation0 [shape = 'u32[]', space=smem, size = 0x4, offset = 0x4, fixed_abs, tag = 'smem constant byte address 0x4 - core index']
  #allocation1 [shape = 'u32[72,128]{1,0:T(1,128)}', space=vmem, size = 0x9000, scoped, tag = 'internal scratch']
  #allocation2 [shape = 'f32[1,1]{1,0:T(1,128)S(1)}', space=vmem, size = 0x200, scoped, tag = 'scoped memory for tpu_custom_call.1']
  %s0 = inlined_call_operand.hbm [shape: f32[8,32], index: 0, kind: input, shape index: {}]
  %s1 = inlined_call_operand.hbm [shape: f32[32,512], index: 1, kind: input, shape index: {}]
  %s2 = inlined_call_operand.hbm [shape: f32[1,512], index: 2, kind: input, shape index: {}]
  %s3 = inlined_call_operand.vmem [shape: f32[1,512], index: 3, kind: input, shape index: {}]
  %s4 = inlined_call_operand.<no memory space> [shape: f32[1,1], index: 4, kind: input, shape index: {}]
  %s5 = inlined_call_operand.vmem [shape: f32[8,1], index: 5, kind: output, shape index: {}]
  %s6 = sld [smem:[#allocation0]]
  $region42: #{tpu_custom_call.1} parent=0
    _
  %s8 = ssub.s32 1, %s6
  %s9 = scalar_select 0, %s8, %s6
  %v10 = vstv %s4
  %11 = vst [vmem:[#allocation2] sm:$0x1] %v10
  $region1: #{tpu_custom_call.1} parent=0
    #allocation3 [shape = 'u8[4096]{0}', space=vmem, size = 0x1000, scoped, tag = 'input window, operand 0, single buffered']
    #allocation4 [shape = 's32[1]{0}', space=sflag, size = 0x4, scoped, tag = 'scoped memory for tpu_custom_call.1']
    #allocation5 [shape = 'u8[65536]{0}', space=vmem, size = 0x10000, scoped, tag = 'input window, operand 1, single buffered']
    #allocation6 [shape = 's32[1]{0}', space=sflag, size = 0x4, scoped, tag = 'scoped memory for tpu_custom_call.1']
    #allocation7 [shape = 'u8[2048]{0}', space=vmem, size = 0x800, scoped, tag = 'input window, operand 2, single buffered']
    %12 = vsyncpa [#allocation4], 0
    %13 = vsyncpa [#allocation6], 0
    // Predicated region
    $region2: #{tpu_custom_call.1} parent=1 // pred_check
      _
    $region3: #{tpu_custom_call.1} parent=1 // pred_check_branch
      %15 = sbr.rel (0) target = $region5
    $region4: #{tpu_custom_call.1} parent=1 // pred_region
      %17 = vsyncadd [#allocation4], 0
      %s19 = sshll.u32 %s0, 4
      %s20 = int_to_ptr.hbm [resolvable:$true] %s19
      %s21 = sshll.u32 [#allocation3], 4
      %s22 = int_to_ptr.vmem [resolvable:$true] %s21
      %24 = dma.hbm_to_vmem [thread:$0]  %s20, 128, %s22, [#allocation4]
    $region5: #{tpu_custom_call.1} parent=1 // pred_fallthru
      _
    // Predicated region
    $region6: #{tpu_custom_call.1} parent=1 // pred_check
      _
    $region7: #{tpu_custom_call.1} parent=1 // pred_check_branch
      %26 = sbr.rel (0) target = $region9
    $region8: #{tpu_custom_call.1} parent=1 // pred_region
      %28 = vsyncadd [#allocation6], 0
      %s29 = sshll.u32 %s1, 4
      %s30 = int_to_ptr.hbm [resolvable:$true] %s29
      %s31 = sshll.u32 [#allocation5], 4
      %s32 = int_to_ptr.vmem [resolvable:$true] %s31
      %37 = dma.hbm_to_vmem [thread:$0]  %s30, 2048, %s32, [#allocation6], 512, 512, 32
    $region9: #{tpu_custom_call.1} parent=1 // pred_fallthru
      _
    // Predicated region
    $region10: #{tpu_custom_call.1} parent=1 // pred_check
      _
    $region11: #{tpu_custom_call.1} parent=1 // pred_check_branch
      %39 = sbr.rel (0) target = $region13
    $region12: #{tpu_custom_call.1} parent=1 // pred_region
      %41 = vsyncadd [#allocation6], 0
      %s43 = sshll.u32 %s2, 4
      %s44 = int_to_ptr.hbm [resolvable:$true] %s43
      %s45 = sshll.u32 [#allocation7], 4
      %s46 = int_to_ptr.vmem [resolvable:$true] %s45
      %48 = dma.hbm_to_vmem [thread:$0]  %s44, 64, %s46, [#allocation6]
    $region13: #{tpu_custom_call.1} parent=1 // pred_fallthru
      _
    // Predicated region
    $region14: #{tpu_custom_call.1} parent=1 // pred_check
      _
    $region15: #{tpu_custom_call.1} parent=1 // pred_check_branch
      %50 = sbr.rel (0) target = $region17
    $region16: #{tpu_custom_call.1} parent=1 // pred_region
      _
    $region17: #{tpu_custom_call.1} parent=1 // pred_fallthru
      _
    // Predicated region
    $region18: #{tpu_custom_call.1} parent=1 // pred_check
      _
    $region19: #{tpu_custom_call.1} parent=1 // pred_check_branch
      %52 = sbr.rel (0) target = $region21
    $region20: #{tpu_custom_call.1} parent=1 // pred_region
      _
    $region21: #{tpu_custom_call.1} parent=1 // pred_fallthru
      _
    // Predicated region
    $region22: #{tpu_custom_call.1} parent=1 // pred_check
      _
    $region23: #{tpu_custom_call.1} parent=1 // pred_check_branch
      %54 = sbr.rel (0) target = $region25
    $region24: #{tpu_custom_call.1} parent=1 // pred_region
      %56 = dma.done [#allocation4], 128
    $region25: #{tpu_custom_call.1} parent=1 // pred_fallthru
      _
    // Predicated region
    $region26: #{tpu_custom_call.1} parent=1 // pred_check
      _
    $region27: #{tpu_custom_call.1} parent=1 // pred_check_branch
      %58 = sbr.rel (0) target = $region29
    $region28: #{tpu_custom_call.1} parent=1 // pred_region
      %60 = dma.done [#allocation6], 2048
    $region29: #{tpu_custom_call.1} parent=1 // pred_fallthru
      _
    // Predicated region
    $region30: #{tpu_custom_call.1} parent=1 // pred_check
      _
    $region31: #{tpu_custom_call.1} parent=1 // pred_check_branch
      %62 = sbr.rel (0) target = $region33
    $region32: #{tpu_custom_call.1} parent=1 // pred_region
      %64 = dma.done [#allocation6], 64
    $region33: #{tpu_custom_call.1} parent=1 // pred_fallthru
      _
    %v65 = vld [vmem:[#allocation3] sm:$0xff]
    %v66 = vld [vmem:[#allocation5] sm:$0xff]
    %v67 = vld [vmem:[#allocation5 + $0x8] sm:$0xff]
    %v68 = vld [vmem:[#allocation5 + $0x10] sm:$0xff]
    %v69 = vld [vmem:[#allocation5 + $0x18] sm:$0xff]
    %v70 = vld [vmem:[#allocation5 + $0x20] sm:$0xff]
    %v71 = vld [vmem:[#allocation5 + $0x28] sm:$0xff]
    %v72 = vld [vmem:[#allocation5 + $0x30] sm:$0xff]
    %v73 = vld [vmem:[#allocation5 + $0x38] sm:$0xff]
    %v74 = vld [vmem:[#allocation5 + $0x40] sm:$0xff]
    %v75 = vld [vmem:[#allocation5 + $0x48] sm:$0xff]
    %v76 = vld [vmem:[#allocation5 + $0x50] sm:$0xff]
    %v77 = vld [vmem:[#allocation5 + $0x58] sm:$0xff]
    %v78 = vld [vmem:[#allocation5 + $0x60] sm:$0xff]
    %v79 = vld [vmem:[#allocation5 + $0x68] sm:$0xff]
    %v80 = vld [vmem:[#allocation5 + $0x70] sm:$0xff]
    %v81 = vld [vmem:[#allocation5 + $0x78] sm:$0xff]
    %v82 = vld [vmem:[#allocation7] sm:$0xf]
    %v84 = vperm.slane %v82, 0
    %v85 = vperm.slane %v82, 1
    %v86 = vperm.slane %v82, 2
    %v87 = vperm.slane %v82, 3
    %vm92 = vcmask 261120
    %v94 = vsel %vm92, %v65, 0
    %96 = vmatpush.msra.mxu0 0.0
    %97 = vmatpush.msra.mxu0 0.0
    %98 = vmatpush.msra.mxu0 0.0
    %99 = vmatpush.msra.mxu0 0.0
    %100 = vmatpush.msra.mxu0 0.0
    %101 = vmatpush.msra.mxu0 0.0
    %102 = vmatpush.msra.mxu0 0.0
    %103 = vmatpush.msra.mxu0 0.0
    %104 = vmatpush.msra.mxu0 0.0
    %105 = vmatpush.msra.mxu0 0.0
    %106 = vmatpush.msra.mxu0 0.0
    %107 = vmatpush.msra.mxu0 0.0
    %108 = vmatpush.msra.mxu0 %v78
    %109 = vmatpush.msra.mxu0 %v74
    %110 = vmatpush.msra.mxu0 %v70
    %111 = vmatpush.msra.mxu0 %v66
    %112 = vmatmul.f32.gmra.mxu0 %v94
    %v113 = vpop.f32.mrf.mxu0
    %v114 = vadd.f32 %v84, %v113
    %115 = vdwg.mxu0
    %116 = vmatpush.msra.mxu0 0.0
    %117 = vmatpush.msra.mxu0 0.0
    %118 = vmatpush.msra.mxu0 0.0
    %119 = vmatpush.msra.mxu0 0.0
    %120 = vmatpush.msra.mxu0 0.0
    %121 = vmatpush.msra.mxu0 0.0
    %122 = vmatpush.msra.mxu0 0.0
    %123 = vmatpush.msra.mxu0 0.0
    %124 = vmatpush.msra.mxu0 0.0
    %125 = vmatpush.msra.mxu0 0.0
    %126 = vmatpush.msra.mxu0 0.0
    %127 = vmatpush.msra.mxu0 0.0
    %128 = vmatpush.msra.mxu0 %v79
    %129 = vmatpush.msra.mxu0 %v75
    %130 = vmatpush.msra.mxu0 %v71
    %131 = vmatpush.msra.mxu0 %v67
    %132 = vmatmul.f32.gmra.mxu0 %v94
    %v133 = vpop.f32.mrf.mxu0
    %v134 = vadd.f32 %v85, %v133
    %135 = vdwg.mxu0
    %136 = vmatpush.msra.mxu0 0.0
    %137 = vmatpush.msra.mxu0 0.0
    %138 = vmatpush.msra.mxu0 0.0
    %139 = vmatpush.msra.mxu0 0.0
    %140 = vmatpush.msra.mxu0 0.0
    %141 = vmatpush.msra.mxu0 0.0
    %142 = vmatpush.msra.mxu0 0.0
    %143 = vmatpush.msra.mxu0 0.0
    %144 = vmatpush.msra.mxu0 0.0
    %145 = vmatpush.msra.mxu0 0.0
    %146 = vmatpush.msra.mxu0 0.0
    %147 = vmatpush.msra.mxu0 0.0
    %148 = vmatpush.msra.mxu0 %v80
    %149 = vmatpush.msra.mxu0 %v76
    %150 = vmatpush.msra.mxu0 %v72
    %151 = vmatpush.msra.mxu0 %v68
    %152 = vmatmul.f32.gmra.mxu0 %v94
    %v153 = vpop.f32.mrf.mxu0
    %v154 = vadd.f32 %v86, %v153
    %155 = vdwg.mxu0
    %156 = vmatpush.msra.mxu0 0.0
    %157 = vmatpush.msra.mxu0 0.0
    %158 = vmatpush.msra.mxu0 0.0
    %159 = vmatpush.msra.mxu0 0.0
    %160 = vmatpush.msra.mxu0 0.0
    %161 = vmatpush.msra.mxu0 0.0
    %162 = vmatpush.msra.mxu0 0.0
    %163 = vmatpush.msra.mxu0 0.0
    %164 = vmatpush.msra.mxu0 0.0
    %165 = vmatpush.msra.mxu0 0.0
    %166 = vmatpush.msra.mxu0 0.0
    %167 = vmatpush.msra.mxu0 0.0
    %168 = vmatpush.msra.mxu0 %v81
    %169 = vmatpush.msra.mxu0 %v77
    %170 = vmatpush.msra.mxu0 %v73
    %171 = vmatpush.msra.mxu0 %v69
    %172 = vmatmul.f32.gmra.mxu0 %v94
    %v173 = vpop.f32.mrf.mxu0
    %v174 = vadd.f32 %v87, %v173
    %175 = vdwg.mxu0
    %v176 = vtanh.pop %v114
    %v177 = vtanh.pop %v134
    %v178 = vtanh.pop %v154
    %v179 = vtanh.pop %v174
    %v180 = vld [vmem:[%s3] sm:$0xf]
    %v182 = vperm.slane %v180, 0
    %v183 = vperm.slane %v180, 1
    %v184 = vperm.slane %v180, 2
    %v185 = vperm.slane %v180, 3
    %v190 = vmul.f32 %v176, %v182
    %v191 = vmul.f32 %v177, %v183
    %v192 = vmul.f32 %v178, %v184
    %v193 = vmul.f32 %v179, %v185
    %v194 = vadd.f32 %v190, %v191
    %v195 = vadd.f32 %v194, %v192
    %v196 = vadd.f32 %v195, %v193
    %197 = vadd.xlane.f32.xlu0 %v196
    %v198 = vpop.xlane.xlu0 %197
    %v199 = vld [vmem:[#allocation2] sm:$0x1]
    %v201 = vperm.slane %v199, 0
    %v203 = vadd.f32 %v198, %v201
    %vm204 = vcmask 7168
    %205 = vst.msk [vmem:[%s5] sm:$0xff] %vm204, %v203
    // Predicated region
    $region34: #{tpu_custom_call.1} parent=1 // pred_check
      _
    $region35: #{tpu_custom_call.1} parent=1 // pred_check_branch
      %207 = sbr.rel (0) target = $region37
    $region36: #{tpu_custom_call.1} parent=1 // pred_region
      _
    $region37: #{tpu_custom_call.1} parent=1 // pred_fallthru
      _
    // Predicated region
    $region38: #{tpu_custom_call.1} parent=1 // pred_check
      _
    $region39: #{tpu_custom_call.1} parent=1 // pred_check_branch
      %209 = sbr.rel (0) target = $region41
    $region40: #{tpu_custom_call.1} parent=1 // pred_region
      _
    $region41: #{tpu_custom_call.1} parent=1 // pred_fallthru
      _
    %210 = vsyncpa [#allocation4], 1
    %211 = vsyncpa [#allocation6], 1

</llo_original>
